<compile_context>
chip_gen: v5e
topology: v5e:2x2
jax: 0.10.0
libtpu: 0.0.40
codegen_flags: <defaults>
</compile_context>

<pallas_src>
import math

import jax
import jax.numpy as jnp
from jax import lax
from jax.experimental import pallas as pl
from jax.experimental.pallas import tpu as pltpu


DT = 0.1
DELTA = math.pi / 3.0
DT_SIN_DELTA = DT * math.sin(DELTA)     # constant-folded  + dt*sin(delta)

_LANE_C = 256                           # lanes per logical row (even, multiple of 128)
_MAX_BLOCK_BYTES = 2 * 1024 * 1024      # 2 MiB blocks: v5e-safe when double-buffered
_SMALL_BATCH = 16384                    # below this, fused XLA beats a kernel launch


def _dynamics_kernel(x_ref, o_ref):
    # x_ref / o_ref: (R_TILE, 256) f32 view of the native row-major (B, 2)
    # buffer.  Even lanes hold x1, odd lanes hold x2.
    x = x_ref[...]
    c = x.shape[-1]

    # Partner values via XLU rotations (jnp.roll semantics: result[j] = x[j - shift]).
    x_next = pltpu.roll(x, shift=c - 1, axis=1)   # value at lane j+1 (x2 seen from x1 lane)
    x_prev = pltpu.roll(x, shift=1, axis=1)       # value at lane j-1 (x1 seen from x2 lane)

    # dx1 valid on even lanes, dx2 valid on odd lanes.
    dx1 = x + DT * x_next
    dx2 = x + DT * (-0.5 * x - jnp.sin(x_prev + DELTA)) + DT_SIN_DELTA

    lane = lax.broadcasted_iota(jnp.int32, x.shape, 1)
    o_ref[...] = jnp.where((lane % 2) == 0, dx1, dx2)


def _dynamics_jnp(x):
    """Plain fused-XLA path (also the reference)."""
    x1 = x[:, 0:1]
    x2 = x[:, 1:2]
    dx1 = x1 + DT * x2
    dx2 = x2 + DT * (-0.5 * x2 - jnp.sin(x1 + DELTA)) + DT_SIN_DELTA
    return jnp.concatenate([dx1, dx2], axis=1)


def dynamics_forward(x, u=None, *, force_kernel=False):
    """x: (B, 2) float32 -> (B, 2) float32 (matches the PyTorch module forward)."""
    del u  # the PyTorch forward() ignores u as well
    B, S = x.shape
    assert S == 2, "state dimension must be 2"

    lane_aligned = (2 * B) % _LANE_C == 0
    if not lane_aligned or (B < _SMALL_BATCH and not force_kernel):
        # Small or unaligned batches: kernel launch/layout overhead dominates.
        return _dynamics_jnp(x)

    rows = (2 * B) // _LANE_C
    max_rows = max(8, _MAX_BLOCK_BYTES // (_LANE_C * x.dtype.itemsize))
    r_tile = rows if rows <= max_rows else max_rows
    grid = (pl.cdiv(rows, r_tile),)

    xv = x.reshape(rows, _LANE_C)   # free row-major view; no data movement

    out = pl.pallas_call(
        _dynamics_kernel,
        out_shape=jax.ShapeDtypeStruct((rows, _LANE_C), x.dtype),
        grid=grid,
        in_specs=[pl.BlockSpec((r_tile, _LANE_C), lambda i: (i, 0))],
        out_specs=pl.BlockSpec((r_tile, _LANE_C), lambda i: (i, 0)),
        compiler_params=pltpu.CompilerParams(
            dimension_semantics=("parallel",)),
        cost_estimate=pl.CostEstimate(
            flops=10 * B, transcendentals=2 * B, bytes_accessed=16 * B),
    )(xv)

    return out.reshape(B, 2)


def _reference(x):
    return _dynamics_jnp(x)


if __name__ == "__main__":
    key = jax.random.PRNGKey(0)

    # Small but lane-aligned batch -> force the Pallas kernel path.
    B = 256
    x = jax.random.normal(key, (B, 2), dtype=jnp.float32)

    out = dynamics_forward(x, force_kernel=True)
    jax.block_until_ready(out)

    ref = _reference(x)
    assert out.shape == (B, 2)
    assert jnp.allclose(out, ref, atol=1e-5, rtol=1e-5), "kernel mismatch vs reference"

    # Tiny / unaligned batch exercises the fused-XLA fast path.
    x_small = jax.random.normal(jax.random.PRNGKey(1), (7, 2), dtype=jnp.float32)
    out_small = dynamics_forward(x_small)
    jax.block_until_ready(out_small)
    assert jnp.allclose(out_small, _reference(x_small), atol=1e-5, rtol=1e-5)

    print("KERNEL_OK")
</pallas_src>

<mosaic_0001>
module attributes {stable_mosaic.version = 11 : i64} {
  func.func @_dynamics_kernel(%arg0: i32, %arg1: memref<2x256xf32, #tpu.memory_space<vmem>>, %arg2: memref<2x256xf32, #tpu.memory_space<vmem>>) attributes {dimension_semantics = [#tpu.dimension_semantics<parallel>], iteration_bounds = array<i64: 1>, scalar_prefetch = 0 : i64, scratch_operands = 0 : i64, tpu.core_type = #tpu.core_type<tc>, window_params = [{transform_indices = @transform_0, window_bounds = array<i64: 2, 256>}, {transform_indices = @transform_1, window_bounds = array<i64: 2, 256>}]} {
    %c0 = arith.constant 0 : index
    %c0_0 = arith.constant 0 : index
    %0 = vector.load %arg1[%c0, %c0_0] : memref<2x256xf32, #tpu.memory_space<vmem>>, vector<2x256xf32>
    %c255_i32 = arith.constant 255 : i32
    %1 = tpu.dynamic_rotate %0 by %c255_i32 dim 1 : vector<2x256xf32>, i32 -> vector<2x256xf32>
    %c1_i32 = arith.constant 1 : i32
    %2 = tpu.dynamic_rotate %0 by %c1_i32 dim 1 : vector<2x256xf32>, i32 -> vector<2x256xf32>
    %cst = arith.constant 1.000000e-01 : f32
    %3 = vector.broadcast %cst : f32 to vector<2x256xf32>
    %4 = arith.mulf %3, %1 : vector<2x256xf32>
    %5 = arith.addf %0, %4 : vector<2x256xf32>
    %cst_1 = arith.constant -5.000000e-01 : f32
    %6 = vector.broadcast %cst_1 : f32 to vector<2x256xf32>
    %7 = arith.mulf %6, %0 : vector<2x256xf32>
    %cst_2 = arith.constant 1.04719758 : f32
    %8 = vector.broadcast %cst_2 : f32 to vector<2x256xf32>
    %9 = arith.addf %2, %8 : vector<2x256xf32>
    %10 = math.sin %9 : vector<2x256xf32>
    %11 = arith.subf %7, %10 : vector<2x256xf32>
    %cst_3 = arith.constant 1.000000e-01 : f32
    %12 = vector.broadcast %cst_3 : f32 to vector<2x256xf32>
    %13 = arith.mulf %12, %11 : vector<2x256xf32>
    %14 = arith.addf %0, %13 : vector<2x256xf32>
    %cst_4 = arith.constant 0.0866025388 : f32
    %15 = vector.broadcast %cst_4 : f32 to vector<2x256xf32>
    %16 = arith.addf %14, %15 : vector<2x256xf32>
    %17 = tpu.iota {dimensions = array<i32: 1>} : vector<2x256xi32>
    %c2_i32 = arith.constant 2 : i32
    %c0_i32 = arith.constant 0 : i32
    %18 = arith.cmpi eq, %c2_i32, %c0_i32 : i32
    %c1_i32_5 = arith.constant 1 : i32
    %19 = arith.select %18, %c1_i32_5, %c2_i32 : i32
    %20 = vector.broadcast %19 : i32 to vector<2x256xi32>
    %21 = arith.remsi %17, %20 : vector<2x256xi32>
    %c0_i32_6 = arith.constant 0 : i32
    %22 = vector.broadcast %c0_i32_6 : i32 to vector<2x256xi32>
    %23 = arith.cmpi ne, %21, %22 : vector<2x256xi32>
    %c0_i32_7 = arith.constant 0 : i32
    %24 = vector.broadcast %c0_i32_7 : i32 to vector<2x256xi32>
    %25 = arith.cmpi slt, %21, %24 : vector<2x256xi32>
    %c0_i32_8 = arith.constant 0 : i32
    %26 = arith.cmpi slt, %19, %c0_i32_8 : i32
    %27 = vector.broadcast %26 : i1 to vector<2x256xi1>
    %28 = vector.broadcast %27 : vector<2x256xi1> to vector<2x256xi1>
    %29 = arith.xori %25, %28 : vector<2x256xi1>
    %30 = arith.andi %29, %23 : vector<2x256xi1>
    %31 = vector.broadcast %19 : i32 to vector<2x256xi32>
    %32 = arith.addi %21, %31 : vector<2x256xi32>
    %33 = arith.select %30, %32, %21 : vector<2x256xi1>, vector<2x256xi32>
    %c0_i32_9 = arith.constant 0 : i32
    %34 = vector.broadcast %c0_i32_9 : i32 to vector<2x256xi32>
    %35 = arith.cmpi eq, %33, %34 : vector<2x256xi32>
    %36 = arith.select %35, %5, %16 : vector<2x256xi1>, vector<2x256xf32>
    %c0_10 = arith.constant 0 : index
    %c0_11 = arith.constant 0 : index
    %37 = vector.load %arg2[%c0_10, %c0_11] : memref<2x256xf32, #tpu.memory_space<vmem>>, vector<2x256xf32>
    tpu.vector_store %arg2[%c0_10, %c0_11], %36 {strides = array<i32>} : memref<2x256xf32, #tpu.memory_space<vmem>>, vector<2x256xf32>,
    return
  }
  func.func @transform_0(%arg0: i32) -> (i32, i32) {
    %c0_i32 = arith.constant 0 : i32
    %c0_i32_0 = arith.constant 0 : i32
    return %arg0, %c0_i32 : i32, i32
  }
  func.func @transform_1(%arg0: i32) -> (i32, i32) {
    %c0_i32 = arith.constant 0 : i32
    %c0_i32_0 = arith.constant 0 : i32
    return %arg0, %c0_i32 : i32, i32
  }
}

</mosaic_0001>

<llo_original>
// kernel: tpu_custom_call.1
$region0: #{tpu_custom_call.1}
  #allocation0 [shape = 'u32[]', space=smem, size = 0x4, offset = 0x4, fixed_abs, tag = 'smem constant byte address 0x4 - core index']
  #allocation1 [shape = 'u32[72,128]{1,0:T(1,128)}', space=vmem, size = 0x9000, scoped, tag = 'internal scratch']
  %s0 = inlined_call_operand.hbm [shape: f32[2,256], index: 0, kind: input, shape index: {}]
  %s1 = inlined_call_operand.hbm [shape: f32[2,256], index: 1, kind: output, shape index: {}]
  %s2 = sld [smem:[#allocation0]]
  $region18: #{tpu_custom_call.1} parent=0
    _
  %s4 = ssub.s32 1, %s2
  %s5 = scalar_select 0, %s4, %s2
  $region1: #{tpu_custom_call.1} parent=0
    #allocation2 [shape = 'u8[2048]{0}', space=vmem, size = 0x800, scoped, tag = 'input window, operand 0, single buffered']
    #allocation3 [shape = 's32[1]{0}', space=sflag, size = 0x4, scoped, tag = 'scoped memory for tpu_custom_call.1']
    #allocation4 [shape = 's32[1]{0}', space=sflag, size = 0x4, scoped, tag = 'scoped memory for tpu_custom_call.1']
    #allocation5 [shape = 'u8[2048]{0}', space=vmem, size = 0x800, scoped, tag = 'output window, operand 0, single buffered']
    %6 = vsyncpa [#allocation3], 0
    %7 = vsyncpa [#allocation4], 0
    // Predicated region
    $region2: #{tpu_custom_call.1} parent=1 // pred_check
      _
    $region3: #{tpu_custom_call.1} parent=1 // pred_check_branch
      %9 = sbr.rel (0) target = $region5
    $region4: #{tpu_custom_call.1} parent=1 // pred_region
      %11 = vsyncadd [#allocation3], 0
      %s13 = sshll.u32 %s0, 4
      %s14 = int_to_ptr.hbm [resolvable:$true] %s13
      %s15 = sshll.u32 [#allocation2], 4
      %s16 = int_to_ptr.vmem [resolvable:$true] %s15
      %18 = dma.hbm_to_vmem [thread:$0]  %s14, 64, %s16, [#allocation3]
    $region5: #{tpu_custom_call.1} parent=1 // pred_fallthru
      _
    // Predicated region
    $region6: #{tpu_custom_call.1} parent=1 // pred_check
      _
    $region7: #{tpu_custom_call.1} parent=1 // pred_check_branch
      %20 = sbr.rel (0) target = $region9
    $region8: #{tpu_custom_call.1} parent=1 // pred_region
      %22 = dma.done [#allocation3], 64
    $region9: #{tpu_custom_call.1} parent=1 // pred_fallthru
      _
    %v23 = vld [vmem:[#allocation2] sm:$0xf]
    %25 = vst [vmem:[#allocation1] ss:$4 sm:$0xff] %v23
    %v26 = vld.sshfl [vmem:[#allocation1] sm:$0xff pattern:$0x73625140]
    %v27 = vld.sshfl [vmem:[#allocation1 + $0x8] sm:$0xff pattern:$0x73625140]
    %30 = vrot.lane.b32.xlu0 %v26, 127
    %v31 = vpop.permute.xlu0 %30
    %32 = vrot.lane.b32.xlu0 %v27, 127
    %v33 = vpop.permute.xlu0 %32
    %v34 = vlaneseq
    %v35 = vand.u32 %v34, 127
    %vm36 = vcmp.lt.s32.totalorder %v35, 127
    %v37 = vsel %vm36, %v31, %v33
    %v38 = vsel %vm36, %v33, %v31
    %39 = vst [vmem:[#allocation1] ss:$4 sm:$0xff] %v23
    %v40 = vld.sshfl [vmem:[#allocation1] sm:$0xff pattern:$0x73625140]
    %v41 = vld.sshfl [vmem:[#allocation1 + $0x8] sm:$0xff pattern:$0x73625140]
    %44 = vrot.lane.b32.xlu0 %v40, 1
    %v45 = vpop.permute.xlu0 %44
    %46 = vrot.lane.b32.xlu0 %v41, 1
    %v47 = vpop.permute.xlu0 %46
    %vm48 = vcmp.lt.s32.totalorder %v35, 1
    %v49 = vsel %vm48, %v45, %v47
    %v50 = vsel %vm48, %v47, %v45
    %v51 = vmul.f32 %v37, 0.1
    %v52 = vmul.f32 %v38, 0.1
    %v55 = vrot.slane %v52, 6
    %vm56 = vcmask 1041408
    %v57 = vsel %vm56, %v51, %v55
    %v59 = vadd.f32 %v23, %v57
    %v60 = vmul.f32 %v23, -0.5
    %v61 = vadd.f32 %v50, 1.0471976
    %v62 = vadd.f32 %v49, 1.0471976
    %v63 = vand.u32 2147483647, %v61
    %vm64 = vcmp.le.f32.partialorder %v63, 0.7853982
    %vm65 = vcmp.lt.s32.totalorder %v61, 0
    %v66 = vand.u32 %v61, 2139095040
    %v67 = vshrl.u32 %v66, 23
    %v68 = vsub.s32 %v67, 127
    %v69 = vand.u32 2147483647, %v61
    %v70 = vand.u32 %v69, 8388607
    %v71 = vor.u32 %v70, 8388608
    %v72 = vsub.s32 0, %v71
    %v73 = vadd.s32 %v68, 1
    %vm74 = vcmp.gt.s32.totalorder %v73, 0
    %v75 = vsel %vm74, %v73, 0
    %v76 = vshrl.u32 %v75, 5
    %v77 = vand.u32 %v75, 31
    %v78 = vsub.s32 32, %v77
    %v79 = vshrl.u32 683565275, %v78
    %v80 = vshll.u32 683565275, %v77
    %v81 = vshrl.u32 2475754826, %v78
    %v82 = vor.u32 %v80, %v81
    %v83 = vshll.u32 2475754826, %v77
    %v84 = vshrl.u32 2131351028, %v78
    %v85 = vor.u32 %v83, %v84
    %v86 = vshll.u32 2131351028, %v77
    %v87 = vshrl.u32 2102212464, %v78
    %v88 = vor.u32 %v86, %v87
    %v89 = vshll.u32 2102212464, %v77
    %v90 = vshrl.u32 920167782, %v78
    %v91 = vor.u32 %v89, %v90
    %v92 = vshll.u32 920167782, %v77
    %v93 = vshrl.u32 1326507024, %v78
    %v94 = vor.u32 %v92, %v93
    %vm95 = vcmp.lt.s32.totalorder %v76, 1
    %vm96 = vcmp.lt.s32.totalorder %v76, 2
    %vm97 = vcmp.lt.s32.totalorder %v76, 3
    %vm98 = vcmp.lt.s32.totalorder %v76, 4
    %v99 = vsel %vm95, %v79, %v82
    %v100 = vsel %vm98, %v88, 2102212464
    %v101 = vsel %vm97, %v85, %v100
    %v102 = vsel %vm96, %v99, %v101
    %v103 = vsel %vm95, %v82, %v85
    %v104 = vsel %vm98, %v91, 920167782
    %v105 = vsel %vm97, %v88, %v104
    %v106 = vsel %vm96, %v103, %v105
    %v107 = vsel %vm95, %v85, %v88
    %v108 = vsel %vm98, %v94, 1326507024
    %v109 = vsel %vm97, %v91, %v108
    %v110 = vsel %vm96, %v107, %v109
    %v111 = vshll.u32 %v71, 8
    %v112 = vand.u32 %v111, 65535
    %v113 = vshrl.u32 %v111, 16
    %v114 = vand.u32 %v110, 65535
    %v115 = vshrl.u32 %v110, 16
    %v116 = vmul.u32 %v112, %v114
    %v117 = vmul.u32 %v112, %v115
    %v118 = vmul.u32 %v113, %v114
    %v119 = vmul.u32 %v113, %v115
    %v120 = vshll.u32 %v117, 16
    %v121 = vshrl.u32 %v117, 16
    %v122 = vshll.u32 %v118, 16
    %v123 = vshrl.u32 %v118, 16
    %vm124 = vc.u32 %v116, %v120
    %v125 = vsel %vm124, 1, 0
    %v126 = vadd.s32 %v116, %v120
    %v127 = vadd.s32 %v119, %v125
    %vm128 = vc.u32 %v126, %v122
    %v129 = vsel %vm128, 1, 0
    %v130 = vadd.s32 %v126, %v122
    %v131 = vadd.s32 %v127, %v129
    %v132 = vadd.s32 %v131, %v121
    %v133 = vadd.s32 %v132, %v123
    %v134 = vand.u32 %v111, 65535
    %v135 = vshrl.u32 %v111, 16
    %v136 = vand.u32 %v106, 65535
    %v137 = vshrl.u32 %v106, 16
    %v138 = vmul.u32 %v134, %v136
    %v139 = vmul.u32 %v134, %v137
    %v140 = vmul.u32 %v135, %v136
    %v141 = vmul.u32 %v135, %v137
    %v142 = vshll.u32 %v139, 16
    %v143 = vshrl.u32 %v139, 16
    %v144 = vshll.u32 %v140, 16
    %v145 = vshrl.u32 %v140, 16
    %vm146 = vc.u32 %v138, %v142
    %v147 = vsel %vm146, 1, 0
    %v148 = vadd.s32 %v138, %v142
    %v149 = vadd.s32 %v141, %v147
    %vm150 = vc.u32 %v148, %v144
    %v151 = vsel %vm150, 1, 0
    %v152 = vadd.s32 %v148, %v144
    %v153 = vadd.s32 %v149, %v151
    %v154 = vadd.s32 %v153, %v143
    %v155 = vadd.s32 %v154, %v145
    %v156 = vmul.u32 %v111, %v102
    %v157 = vadd.s32 %v133, %v152
    %vm158 = vc.u32 %v133, %v152
    %v159 = vadd.s32 %v155, 1
    %v160 = vsel %vm158, %v159, %v155
    %v161 = vadd.s32 %v156, %v160
    %v162 = vadd.s32 %v161, 536870912
    %v163 = vshrl.u32 %v162, 30
    %v164 = vshll.u32 %v163, 30
    %v165 = vsub.s32 %v161, %v164
    %vm166 = vcmp.lt.s32.totalorder %v165, 0
    %v167 = vsub.s32 0, %v165
    %v168 = vsel %vm166, %v167, %v165
    %v169 = vclz %v168
    %v170 = vsub.s32 %v169, 2
    %vm171 = vcmp.gt.s32.totalorder 0, %v170
    %v172 = vsel %vm171, 0, %v170
    %v173 = vsub.s32 32, %v172
    %v174 = vshll.u32 %v165, %v172
    %v175 = vshrl.u32 %v157, %v173
    %v176 = vor.u32 %v174, %v175
    %v177 = vsub.s32 4294967266, %v172
    %v178 = vadd.s32 %v177, 127
    %v179 = vshll.u32 %v178, 23
    %v180 = vor.u32 4788187, %v179
    %v181 = vand.u32 2147483647, %v180
    %v183 = vcvt.s32.f32 %v176
    %v184 = vmul.f32 %v183, %v181
    %v185 = vxor.u32 %v184, 2147483648
    %v186 = vsel %vm65, %v185, %v184
    %v187 = vsub.s32 4, %v163
    %v188 = vsel %vm65, %v187, %v163
    %v189 = vsel %vm64, %v61, %v186
    %v190 = vsel %vm64, 0, %v188
    %v191 = vmul.f32 %v189, %v189
    %v192 = vmul.f32 %v191, -0.001358992
    %v193 = vadd.f32 %v192, 0.041655596
    %v194 = vmul.f32 %v191, %v193
    %v195 = vadd.f32 %v194, -0.4999988
    %v196 = vmul.f32 %v191, %v195
    %v197 = vadd.f32 1.0, %v196
    %v198 = vmul.f32 %v189, %v189
    %v199 = vmul.f32 %v198, -0.00019511016
    %v200 = vadd.f32 %v199, 0.008332121
    %v201 = vmul.f32 %v198, %v200
    %v202 = vadd.f32 %v201, -0.16666654
    %v203 = vmul.f32 %v198, %v202
    %v204 = vadd.f32 %v203, 1.0
    %v205 = vmul.f32 %v204, %v189
    %vm206 = vweird.f32 %v61
    %v207 = vadd.s32 %v190, 3
    %v208 = vand.u32 %v207, 3
    %vm209 = vcmp.lt.s32.totalorder %v208, 2
    %vm210 = vcmp.eq.s32.totalorder %v208, 0
    %v211 = vxor.u32 %v205, 2147483648
    %v212 = vsel %vm210, %v197, %v211
    %vm213 = vcmp.eq.s32.totalorder %v208, 2
    %v214 = vxor.u32 %v197, 2147483648
    %v215 = vsel %vm213, %v214, %v205
    %v216 = vsel %vm209, %v212, %v215
    %v217 = vsel %vm206, nan, %v216
    %v218 = vand.u32 2147483647, %v62
    %vm219 = vcmp.le.f32.partialorder %v218, 0.7853982
    %vm220 = vcmp.lt.s32.totalorder %v62, 0
    %v221 = vand.u32 %v62, 2139095040
    %v222 = vshrl.u32 %v221, 23
    %v223 = vsub.s32 %v222, 127
    %v224 = vand.u32 2147483647, %v62
    %v225 = vand.u32 %v224, 8388607
    %v226 = vor.u32 %v225, 8388608
    %v227 = vsub.s32 0, %v226
    %v228 = vadd.s32 %v223, 1
    %vm229 = vcmp.gt.s32.totalorder %v228, 0
    %v230 = vsel %vm229, %v228, 0
    %v231 = vshrl.u32 %v230, 5
    %v232 = vand.u32 %v230, 31
    %v233 = vsub.s32 32, %v232
    %v234 = vshrl.u32 683565275, %v233
    %v235 = vshll.u32 683565275, %v232
    %v236 = vshrl.u32 2475754826, %v233
    %v237 = vor.u32 %v235, %v236
    %v238 = vshll.u32 2475754826, %v232
    %v239 = vshrl.u32 2131351028, %v233
    %v240 = vor.u32 %v238, %v239
    %v241 = vshll.u32 2131351028, %v232
    %v242 = vshrl.u32 2102212464, %v233
    %v243 = vor.u32 %v241, %v242
    %v244 = vshll.u32 2102212464, %v232
    %v245 = vshrl.u32 920167782, %v233
    %v246 = vor.u32 %v244, %v245
    %v247 = vshll.u32 920167782, %v232
    %v248 = vshrl.u32 1326507024, %v233
    %v249 = vor.u32 %v247, %v248
    %vm250 = vcmp.lt.s32.totalorder %v231, 1
    %vm251 = vcmp.lt.s32.totalorder %v231, 2
    %vm252 = vcmp.lt.s32.totalorder %v231, 3
    %vm253 = vcmp.lt.s32.totalorder %v231, 4
    %v254 = vsel %vm250, %v234, %v237
    %v255 = vsel %vm253, %v243, 2102212464
    %v256 = vsel %vm252, %v240, %v255
    %v257 = vsel %vm251, %v254, %v256
    %v258 = vsel %vm250, %v237, %v240
    %v259 = vsel %vm253, %v246, 920167782
    %v260 = vsel %vm252, %v243, %v259
    %v261 = vsel %vm251, %v258, %v260
    %v262 = vsel %vm250, %v240, %v243
    %v263 = vsel %vm253, %v249, 1326507024
    %v264 = vsel %vm252, %v246, %v263
    %v265 = vsel %vm251, %v262, %v264
    %v266 = vshll.u32 %v226, 8
    %v267 = vand.u32 %v266, 65535
    %v268 = vshrl.u32 %v266, 16
    %v269 = vand.u32 %v265, 65535
    %v270 = vshrl.u32 %v265, 16
    %v271 = vmul.u32 %v267, %v269
    %v272 = vmul.u32 %v267, %v270
    %v273 = vmul.u32 %v268, %v269
    %v274 = vmul.u32 %v268, %v270
    %v275 = vshll.u32 %v272, 16
    %v276 = vshrl.u32 %v272, 16
    %v277 = vshll.u32 %v273, 16
    %v278 = vshrl.u32 %v273, 16
    %vm279 = vc.u32 %v271, %v275
    %v280 = vsel %vm279, 1, 0
    %v281 = vadd.s32 %v271, %v275
    %v282 = vadd.s32 %v274, %v280
    %vm283 = vc.u32 %v281, %v277
    %v284 = vsel %vm283, 1, 0
    %v285 = vadd.s32 %v281, %v277
    %v286 = vadd.s32 %v282, %v284
    %v287 = vadd.s32 %v286, %v276
    %v288 = vadd.s32 %v287, %v278
    %v289 = vand.u32 %v266, 65535
    %v290 = vshrl.u32 %v266, 16
    %v291 = vand.u32 %v261, 65535
    %v292 = vshrl.u32 %v261, 16
    %v293 = vmul.u32 %v289, %v291
    %v294 = vmul.u32 %v289, %v292
    %v295 = vmul.u32 %v290, %v291
    %v296 = vmul.u32 %v290, %v292
    %v297 = vshll.u32 %v294, 16
    %v298 = vshrl.u32 %v294, 16
    %v299 = vshll.u32 %v295, 16
    %v300 = vshrl.u32 %v295, 16
    %vm301 = vc.u32 %v293, %v297
    %v302 = vsel %vm301, 1, 0
    %v303 = vadd.s32 %v293, %v297
    %v304 = vadd.s32 %v296, %v302
    %vm305 = vc.u32 %v303, %v299
    %v306 = vsel %vm305, 1, 0
    %v307 = vadd.s32 %v303, %v299
    %v308 = vadd.s32 %v304, %v306
    %v309 = vadd.s32 %v308, %v298
    %v310 = vadd.s32 %v309, %v300
    %v311 = vmul.u32 %v266, %v257
    %v312 = vadd.s32 %v288, %v307
    %vm313 = vc.u32 %v288, %v307
    %v314 = vadd.s32 %v310, 1
    %v315 = vsel %vm313, %v314, %v310
    %v316 = vadd.s32 %v311, %v315
    %v317 = vadd.s32 %v316, 536870912
    %v318 = vshrl.u32 %v317, 30
    %v319 = vshll.u32 %v318, 30
    %v320 = vsub.s32 %v316, %v319
    %vm321 = vcmp.lt.s32.totalorder %v320, 0
    %v322 = vsub.s32 0, %v320
    %v323 = vsel %vm321, %v322, %v320
    %v324 = vclz %v323
    %v325 = vsub.s32 %v324, 2
    %vm326 = vcmp.gt.s32.totalorder 0, %v325
    %v327 = vsel %vm326, 0, %v325
    %v328 = vsub.s32 32, %v327
    %v329 = vshll.u32 %v320, %v327
    %v330 = vshrl.u32 %v312, %v328
    %v331 = vor.u32 %v329, %v330
    %v332 = vsub.s32 4294967266, %v327
    %v333 = vadd.s32 %v332, 127
    %v334 = vshll.u32 %v333, 23
    %v335 = vor.u32 4788187, %v334
    %v336 = vand.u32 2147483647, %v335
    %v338 = vcvt.s32.f32 %v331
    %v339 = vmul.f32 %v338, %v336
    %v340 = vxor.u32 %v339, 2147483648
    %v341 = vsel %vm220, %v340, %v339
    %v342 = vsub.s32 4, %v318
    %v343 = vsel %vm220, %v342, %v318
    %v344 = vsel %vm219, %v62, %v341
    %v345 = vsel %vm219, 0, %v343
    %v346 = vmul.f32 %v344, %v344
    %v347 = vmul.f32 %v346, -0.001358992
    %v348 = vadd.f32 %v347, 0.041655596
    %v349 = vmul.f32 %v346, %v348
    %v350 = vadd.f32 %v349, -0.4999988
    %v351 = vmul.f32 %v346, %v350
    %v352 = vadd.f32 1.0, %v351
    %v353 = vmul.f32 %v344, %v344
    %v354 = vmul.f32 %v353, -0.00019511016
    %v355 = vadd.f32 %v354, 0.008332121
    %v356 = vmul.f32 %v353, %v355
    %v357 = vadd.f32 %v356, -0.16666654
    %v358 = vmul.f32 %v353, %v357
    %v359 = vadd.f32 %v358, 1.0
    %v360 = vmul.f32 %v359, %v344
    %vm361 = vweird.f32 %v62
    %v362 = vadd.s32 %v345, 3
    %v363 = vand.u32 %v362, 3
    %vm364 = vcmp.lt.s32.totalorder %v363, 2
    %vm365 = vcmp.eq.s32.totalorder %v363, 0
    %v366 = vxor.u32 %v360, 2147483648
    %v367 = vsel %vm365, %v352, %v366
    %vm368 = vcmp.eq.s32.totalorder %v363, 2
    %v369 = vxor.u32 %v352, 2147483648
    %v370 = vsel %vm368, %v369, %v360
    %v371 = vsel %vm364, %v367, %v370
    %v372 = vsel %vm361, nan, %v371
    %v375 = vrot.slane %v372, 6
    %v376 = vsel %vm56, %v217, %v375
    %v378 = vsub.f32 %v60, %v376
    %v379 = vmul.f32 %v378, 0.1
    %v380 = vadd.f32 %v23, %v379
    %v381 = vadd.f32 %v380, 0.08660254
    %v382 = vadd.s32 %v35, 128
    %vm383 = vcmp.lt.s32.totalorder %v35, 0
    %v384 = vsub.s32 0, %v35
    %v385 = vsel %vm383, %v384, %v35
    %v386 = vshrl.u32 %v385, 1
    %v387 = vand.u32 %v385, 1
    %v388 = vsub.s32 0, %v387
    %v389 = vsel %vm383, %v388, %v387
    %vm390 = vcmp.lt.s32.totalorder %v382, 0
    %v391 = vsub.s32 0, %v382
    %v392 = vsel %vm390, %v391, %v382
    %v393 = vshrl.u32 %v392, 1
    %v394 = vand.u32 %v392, 1
    %v395 = vsub.s32 0, %v394
    %v396 = vsel %vm390, %v395, %v394
    %vm397 = vcmp.ne.s32.totalorder %v389, 0
    %vm398 = vcmp.ne.s32.totalorder %v396, 0
    %vm399 = vcmp.lt.s32.totalorder %v389, 0
    %vm400 = vcmp.lt.s32.totalorder %v396, 0
    %vm401 = vmand %vm399, %vm397
    %vm402 = vmand %vm400, %vm398
    %v403 = vadd.s32 %v389, 2
    %v404 = vadd.s32 %v396, 2
    %v405 = vsel %vm401, %v403, %v389
    %v406 = vsel %vm402, %v404, %v396
    %vm407 = vcmp.eq.s32.totalorder %v405, 0
    %vm408 = vcmp.eq.s32.totalorder %v406, 0
    %410 = vst [vmem:[#allocation1] ss:$4 sm:$0xff] %v59
    %v411 = vld.sshfl [vmem:[#allocation1] sm:$0xff pattern:$0x73625140]
    %v412 = vld.sshfl [vmem:[#allocation1 + $0x8] sm:$0xff pattern:$0x73625140]
    %416 = vst [vmem:[#allocation1] ss:$4 sm:$0xff] %v381
    %v417 = vld.sshfl [vmem:[#allocation1] sm:$0xff pattern:$0x73625140]
    %v418 = vld.sshfl [vmem:[#allocation1 + $0x8] sm:$0xff pattern:$0x73625140]
    %v421 = vsel %vm407, %v411, %v417
    %v422 = vsel %vm408, %v412, %v418
    %v425 = vrot.slane %v422, 6
    %v426 = vsel %vm56, %v421, %v425
    %428 = vst [vmem:[#allocation5] sm:$0xf] %v426
    // Predicated region
    $region10: #{tpu_custom_call.1} parent=1 // pred_check
      _
    $region11: #{tpu_custom_call.1} parent=1 // pred_check_branch
      %430 = sbr.rel (0) target = $region13
    $region12: #{tpu_custom_call.1} parent=1 // pred_region
      %432 = vsyncadd [#allocation4], 0
      %s434 = sshll.u32 [#allocation5], 4
      %s435 = int_to_ptr.vmem [resolvable:$true] %s434
      %s436 = sshll.u32 %s1, 4
      %s437 = int_to_ptr.hbm [resolvable:$true] %s436
      %439 = dma.vmem_to_hbm [thread:$0]  %s435, 64, %s437, [#allocation4]
    $region13: #{tpu_custom_call.1} parent=1 // pred_fallthru
      _
    // Predicated region
    $region14: #{tpu_custom_call.1} parent=1 // pred_check
      _
    $region15: #{tpu_custom_call.1} parent=1 // pred_check_branch
      %441 = sbr.rel (0) target = $region17
    $region16: #{tpu_custom_call.1} parent=1 // pred_region
      %443 = dma.done [#allocation4], 64
    $region17: #{tpu_custom_call.1} parent=1 // pred_fallthru
      _
    %444 = vsyncpa [#allocation3], 1
    %445 = vsyncpa [#allocation4], 1

</llo_original>
